<compile_context>
chip_gen: v5e
topology: v5e:2x2
jax: 0.10.0
libtpu: 0.0.40
codegen_flags: <defaults>
</compile_context>

<pallas_src>
import functools

import numpy as np
import jax
import jax.numpy as jnp
from jax.experimental import pallas as pl
from jax.experimental.pallas import tpu as pltpu


# ----------------------------------------------------------------------------
# Parameter init (deterministic port of the PyTorch / numpy initializer).
# ----------------------------------------------------------------------------
def orthonormal_initializer(output_size, input_size):
    rng = np.random.RandomState(0)  # deterministic
    I = np.eye(output_size)
    lr = 0.1
    eps = 0.05 / (output_size + input_size)
    success = False
    tries = 0
    Q = rng.randn(input_size, output_size) / np.sqrt(output_size)
    while not success and tries < 10:
        Q = rng.randn(input_size, output_size) / np.sqrt(output_size)
        for _ in range(100):
            QTQmI = Q.T.dot(Q) - I
            loss = np.sum(QTQmI ** 2 / 2)
            Q2 = Q ** 2
            Q -= lr * Q.dot(QTQmI) / (
                np.abs(Q2 + Q2.sum(axis=0, keepdims=True)
                       + Q2.sum(axis=1, keepdims=True) - 1) + eps)
            if np.max(Q) > 1e6 or loss > 1e6 or (not np.isfinite(loss)):
                tries += 1
                lr /= 2
                break
        else:
            success = True
    if not success:
        Q = rng.randn(input_size, output_size) / np.sqrt(output_size)
    # Returns W of shape (output_size, input_size), matching nn.Linear.weight
    return np.transpose(Q.astype(np.float32))


# ----------------------------------------------------------------------------
# Generation-aware configuration & tile selection.
# ----------------------------------------------------------------------------
def _round_up(x, m):
    return ((x + m - 1) // m) * m


# (K/N lane alignment, VMEM cap for vmem_limit_bytes, TensorCores per chip)
_GEN_CONFIG = {
    "v5e": (128, 100 * 1024 * 1024, 1),   # 128 MiB VMEM, 4x128x128 MXU
    "v6e": (256, 100 * 1024 * 1024, 1),   # 128 MiB VMEM, 2x256x256 MXU
    "v7x": (256, 48 * 1024 * 1024, 2),    # 64 MiB VMEM/TC, 2 TCs per chip
    "unknown": (128, 48 * 1024 * 1024, 2),
}


def _tpu_generation():
    try:
        kind = jax.devices()[0].device_kind.lower()
    except Exception:
        return "unknown"
    if "v5 lite" in kind or "v5e" in kind or "v5lite" in kind:
        return "v5e"
    if "v6" in kind:
        return "v6e"
    if "v7" in kind or "7x" in kind:
        return "v7x"
    return "unknown"


def _select_tiles(M, K_pad, N_pad, align, sub, vmem_budget, in_itemsize, num_tc):
    """Pick (tm, tk, tn, M_pad, tile_bytes).

    Preference order (per perf review): a single K step (tk == K_pad) first,
    then the widest tn, then the tallest tm that fit the VMEM byte budget.
    """
    M_sub = _round_up(max(M, 1), sub)

    def _bytes(tm, tk, tn, gk):
        b = in_itemsize * 2 * (tm * tk + tk * tn)   # double-buffered x / W^T
        b += 4 * 2 * tn                             # double-buffered bias (f32)
        b += 4 * 2 * tm * tn                        # double-buffered output
        if gk > 1:
            b += 4 * tm * tn                        # f32 accumulator scratch
        return b

    n_std = [c for c in (1024, 512, 256, 128) if c % align == 0]
    tn_cands = sorted(
        {c for c in n_std if c < N_pad and N_pad % c == 0}
        | ({N_pad} if N_pad <= 2048 else set()),
        reverse=True) or [N_pad]

    k_std = [c for c in (4096, 2048, 1024, 512, 256, 128) if c % align == 0]
    tk_cands = sorted(
        {K_pad} | {c for c in k_std if c < K_pad and K_pad % c == 0},
        reverse=True)

    m_std = [c for c in (512, 256, 128, 64, 32, 16, 8) if c % sub == 0]
    tm_cands = sorted(
        ({M_sub} if M_sub <= 512 else set())
        | {c for c in m_std if c <= min(M_sub, 512)},
        reverse=True) or [sub]

    chosen = None
    for tk in tk_cands:                 # tk == K_pad (gk == 1) tried first
        gk = K_pad // tk
        for tn in tn_cands:
            for tm in tm_cands:
                if _bytes(tm, tk, tn, gk) <= vmem_budget:
                    chosen = (tm, tk, tn)
                    break
            if chosen is not None:
                break
        if chosen is not None:
            break
    if chosen is None:                  # pathological: take the smallest tiles
        chosen = (tm_cands[-1], tk_cands[-1], tn_cands[-1])
    tm, tk, tn = chosen

    gk = K_pad // tk
    gn = N_pad // tn
    M_pad = _round_up(max(M, 1), tm)
    gm = M_pad // tm

    # v7x: both TensorCores shard only the "parallel" grid axes; make sure
    # there are at least 2 output tiles (prefer splitting M) so neither core
    # sits idle.
    if num_tc >= 2 and gn * gm < num_tc and M_sub >= 2 * sub:
        tm = _round_up(-(-M_sub // 2), sub)
        M_pad = _round_up(max(M, 1), tm)
        gm = M_pad // tm

    return tm, tk, tn, M_pad, _bytes(tm, tk, tn, gk)


# ----------------------------------------------------------------------------
# Kernels.
# ----------------------------------------------------------------------------
def _kernel_fused(x_ref, wt_ref, b_ref, o_ref, *, activation):
    # Single K step: matmul + bias + activation fused, no accumulator scratch.
    y = jnp.dot(x_ref[...], wt_ref[...], preferred_element_type=jnp.float32)
    y = y + b_ref[...]
    if activation is not None:
        y = activation(y)
    o_ref[...] = y.astype(o_ref.dtype)


def _kernel_acc(x_ref, wt_ref, b_ref, o_ref, acc_ref, *, activation):
    # K split across grid axis 2 (innermost, "arbitrary"): f32 accumulator,
    # bias + activation applied once in the k == last epilogue.
    k = pl.program_id(2)

    @pl.when(k == 0)
    def _():
        acc_ref[...] = jnp.zeros_like(acc_ref)

    acc_ref[...] += jnp.dot(x_ref[...], wt_ref[...],
                            preferred_element_type=jnp.float32)

    @pl.when(k == pl.num_programs(2) - 1)
    def _():
        y = acc_ref[...] + b_ref[...]
        if activation is not None:
            y = activation(y)
        o_ref[...] = y.astype(o_ref.dtype)


# ----------------------------------------------------------------------------
# pallas_call wrapper.
# ----------------------------------------------------------------------------
def _nonlinear_matmul_pallas(x2d, wt_padded, b_padded, activation, *,
                             compute_dtype, out_dtype, chip_cfg, n_out):
    """y = activation(x2d @ W^T + b); x2d (M, K), wt_padded (K_pad, N_pad)."""
    M, K = x2d.shape
    K_pad, N_pad = wt_padded.shape
    align, vmem_cap, num_tc = chip_cfg
    in_itemsize = jnp.dtype(compute_dtype).itemsize
    # Sublane granularity for the M axis (f32: 8, bf16: 16, int8/fp8: 32).
    sub = 8 if in_itemsize >= 4 else (16 if in_itemsize == 2 else 32)

    tm, tk, tn, M_pad, tile_bytes = _select_tiles(
        M, K_pad, N_pad, align, sub, int(vmem_cap * 0.8), in_itemsize, num_tc)
    gm, gn, gk = M_pad // tm, N_pad // tn, K_pad // tk

    # Only x is cast / padded per call; W^T and bias were prepared in __init__.
    if x2d.dtype != compute_dtype:
        x2d = x2d.astype(compute_dtype)
    if (M_pad, K_pad) != (M, K):
        x2d = jnp.pad(x2d, ((0, M_pad - M), (0, K_pad - K)))

    vmem_limit = int(min(vmem_cap, max(32 * 1024 * 1024, 2 * tile_bytes)))
    cost = pl.CostEstimate(
        flops=2 * M_pad * N_pad * K_pad,
        bytes_accessed=int(in_itemsize * (M_pad * K_pad + K_pad * N_pad)
                           + 4 * N_pad
                           + jnp.dtype(out_dtype).itemsize * M_pad * N_pad),
        transcendentals=(M_pad * N_pad) if activation is not None else 0,
    )

    if gk == 1:
        # Fused path on a 2-D grid.  Pick the grid ordering that minimizes HBM
        # traffic: the operand whose block index stays constant along the
        # inner grid axis gets its DMA skipped (stays VMEM-resident).
        kernel = functools.partial(_kernel_fused, activation=activation)
        traffic_w_res = gn * M_pad * K_pad + K_pad * N_pad   # x streamed gn times
        traffic_x_res = M_pad * K_pad + gm * K_pad * N_pad   # W^T streamed gm times
        if traffic_w_res <= traffic_x_res:
            grid = (gn, gm)      # (j, i): W^T tile resident across the M sweep
            x_map = lambda j, i: (i, 0)
            w_map = lambda j, i: (0, j)
            b_map = lambda j, i: (0, j)
            o_map = lambda j, i: (i, j)
        else:
            grid = (gm, gn)      # (i, j): x tile resident across the N sweep
            x_map = lambda i, j: (i, 0)
            w_map = lambda i, j: (0, j)
            b_map = lambda i, j: (0, j)
            o_map = lambda i, j: (i, j)
        grid_spec = pltpu.PrefetchScalarGridSpec(
            num_scalar_prefetch=0,
            grid=grid,
            in_specs=[pl.BlockSpec((tm, tk), x_map),   # x tile (full K)
                      pl.BlockSpec((tk, tn), w_map),   # W^T tile (full K)
                      pl.BlockSpec((1, tn), b_map)],   # bias tile
            out_specs=pl.BlockSpec((tm, tn), o_map),
            scratch_shapes=[],
        )
        dim_sem = ("parallel", "parallel")
    else:
        # K split: accumulator kernel, K innermost ("arbitrary").
        kernel = functools.partial(_kernel_acc, activation=activation)
        grid_spec = pltpu.PrefetchScalarGridSpec(
            num_scalar_prefetch=0,
            grid=(gn, gm, gk),
            in_specs=[pl.BlockSpec((tm, tk), lambda j, i, k: (i, k)),
                      pl.BlockSpec((tk, tn), lambda j, i, k: (k, j)),
                      pl.BlockSpec((1, tn), lambda j, i, k: (0, j))],
            out_specs=pl.BlockSpec((tm, tn), lambda j, i, k: (i, j)),
            scratch_shapes=[pltpu.VMEM((tm, tn), jnp.float32)],
        )
        dim_sem = ("parallel", "parallel", "arbitrary")

    out2d = pl.pallas_call(
        kernel,
        out_shape=jax.ShapeDtypeStruct((M_pad, N_pad), out_dtype),
        grid_spec=grid_spec,
        compiler_params=pltpu.CompilerParams(
            dimension_semantics=dim_sem,
            vmem_limit_bytes=vmem_limit,
        ),
        cost_estimate=cost,
    )(x2d, wt_padded, b_padded)

    if (M_pad, N_pad) != (M, n_out):
        out2d = out2d[:M, :n_out]
    return out2d


# ----------------------------------------------------------------------------
# Module.
# ----------------------------------------------------------------------------
class NonLinear:
    """JAX/Pallas equivalent of the PyTorch NonLinear module (Linear + activation)."""

    # Below this many MACs a fused XLA dot beats kernel-dispatch overhead.
    _PALLAS_MIN_MACS = 1 << 20

    def __init__(self, input_size, hidden_size, activation=None,
                 use_pallas=None, compute_dtype=jnp.float32,
                 out_dtype=jnp.float32):
        self.input_size = input_size
        self.hidden_size = hidden_size
        if activation is not None and not callable(activation):
            raise ValueError(
                "activation must be callable: type={}".format(type(activation)))
        self._activation = activation          # None => identity (PyTorch default)
        self._use_pallas = use_pallas          # None => auto dispatch by size
        # compute_dtype=jnp.bfloat16 hits the bf16 MXU peak on v5e/v6e/v7x and
        # halves input HBM/VMEM traffic (accumulation stays f32 inside the
        # kernel).  Default remains f32 to match the f32 PyTorch reference;
        # opt into bf16 where the consumer tolerates the drift.
        self._compute_dtype = compute_dtype
        self._out_dtype = out_dtype

        self._chip_cfg = _GEN_CONFIG[_tpu_generation()]
        align = self._chip_cfg[0]

        # Deterministic parameter init (matches reset_parameters()).
        W = orthonormal_initializer(hidden_size, input_size)   # (hidden, input)
        b = np.zeros(hidden_size, dtype=np.float32)
        self.wt = jnp.asarray(W.T)                  # (input, hidden) = W^T, f32
        self.b = jnp.asarray(b).reshape(1, hidden_size)

        # Hoisted one-time padding + compute-dtype cast of W^T / bias so the
        # per-call path never re-pads or re-casts the K*N weight.
        K_pad = _round_up(input_size, align)
        N_pad = _round_up(hidden_size, align)
        wt_p = self.wt.astype(compute_dtype)
        if (K_pad, N_pad) != (input_size, hidden_size):
            wt_p = jnp.pad(wt_p, ((0, K_pad - input_size),
                                  (0, N_pad - hidden_size)))
        b_p = self.b
        if N_pad != hidden_size:
            b_p = jnp.pad(b_p, ((0, 0), (0, N_pad - hidden_size)))
        self._wt_padded = wt_p       # (K_pad, N_pad), compute dtype
        self._b_padded = b_p         # (1, N_pad), f32

    def __call__(self, x):
        # x: (..., input_size) — same leading-dim flexibility as nn.Linear.
        orig_shape = x.shape
        assert orig_shape[-1] == self.input_size
        leading = orig_shape[:-1]
        K, N = self.input_size, self.hidden_size
        M = int(np.prod(leading)) if leading else 1
        x2d = x.reshape(M, K)

        use_pallas = self._use_pallas
        if use_pallas is None:
            use_pallas = (M * K * N) >= self._PALLAS_MIN_MACS
        if M == 0:
            use_pallas = False   # empty batch: nothing for the kernel to do

        if use_pallas:
            out2d = _nonlinear_matmul_pallas(
                x2d, self._wt_padded, self._b_padded, self._activation,
                compute_dtype=self._compute_dtype, out_dtype=self._out_dtype,
                chip_cfg=self._chip_cfg, n_out=N)
        else:
            out2d = jnp.dot(x2d.astype(self._compute_dtype),
                            self.wt.astype(self._compute_dtype),
                            preferred_element_type=jnp.float32) + self.b
            if self._activation is not None:
                out2d = self._activation(out2d)
            out2d = out2d.astype(self._out_dtype)

        return out2d.reshape(*leading, N)


if __name__ == "__main__":
    # Shapes implied by typical use: x is (batch, seq, input_size).
    batch, seq, input_size, hidden_size = 2, 8, 32, 32

    key = jax.random.PRNGKey(0)
    x = jax.random.normal(key, (batch, seq, input_size), dtype=jnp.float32)

    # Force the Pallas path so the kernel actually executes at this small size
    # (the auto-dispatcher would otherwise fall back to plain jnp.dot here).
    mod = NonLinear(input_size, hidden_size, activation=None, use_pallas=True)
    y = jax.block_until_ready(mod(x))

    # Reference check in plain JAX (y = x @ W^T + b), f32 path: tight tolerance.
    y_ref = jnp.einsum("bsk,kn->bsn", x, mod.wt) + mod.b.reshape(1, 1, -1)
    np.testing.assert_allclose(np.asarray(y), np.asarray(y_ref),
                               rtol=1e-5, atol=1e-5)
    assert y.shape == (batch, seq, hidden_size)

    # Non-trivial activation through the same fused epilogue.
    mod_tanh = NonLinear(input_size, hidden_size, activation=jnp.tanh,
                         use_pallas=True)
    y2 = jax.block_until_ready(mod_tanh(x))
    y2_ref = jnp.tanh(jnp.einsum("bsk,kn->bsn", x, mod_tanh.wt)
                      + mod_tanh.b.reshape(1, 1, -1))
    np.testing.assert_allclose(np.asarray(y2), np.asarray(y2_ref),
                               rtol=1e-5, atol=1e-5)

    # bf16-operand path (f32 accumulation inside the kernel): tolerance-aware
    # check, since bf16 inputs drift from the f32 reference by design.
    mod_bf16 = NonLinear(input_size, hidden_size, activation=jnp.tanh,
                         use_pallas=True, compute_dtype=jnp.bfloat16)
    y3 = jax.block_until_ready(mod_bf16(x))
    np.testing.assert_allclose(np.asarray(y3), np.asarray(y2_ref),
                               rtol=5e-2, atol=1e-1)

    print("KERNEL_OK")
</pallas_src>

<mosaic_0001>
module attributes {stable_mosaic.version = 11 : i64} {
  func.func @_kernel_fused(%arg0: i32, %arg1: i32, %arg2: memref<8x128xf32, #tpu.memory_space<vmem>>, %arg3: memref<128x128xf32, #tpu.memory_space<vmem>>, %arg4: memref<1x128xf32, #tpu.memory_space<vmem>>, %arg5: memref<8x128xf32, #tpu.memory_space<vmem>>) attributes {dimension_semantics = [#tpu.dimension_semantics<parallel>, #tpu.dimension_semantics<parallel>], iteration_bounds = array<i64: 1, 2>, scalar_prefetch = 0 : i64, scratch_operands = 0 : i64, tpu.core_type = #tpu.core_type<tc>, window_params = [{transform_indices = @transform_0, window_bounds = array<i64: 8, 128>}, {transform_indices = @transform_1, window_bounds = array<i64: 128, 128>}, {transform_indices = @transform_2, window_bounds = array<i64: 1, 128>}, {transform_indices = @transform_3, window_bounds = array<i64: 8, 128>}]} {
    %c0 = arith.constant 0 : index
    %c0_0 = arith.constant 0 : index
    %0 = vector.load %arg2[%c0, %c0_0] : memref<8x128xf32, #tpu.memory_space<vmem>>, vector<8x128xf32>
    %c0_1 = arith.constant 0 : index
    %c0_2 = arith.constant 0 : index
    %1 = vector.load %arg3[%c0_1, %c0_2] : memref<128x128xf32, #tpu.memory_space<vmem>>, vector<128x128xf32>
    %cst = arith.constant dense<0.000000e+00> : vector<8x128xf32>
    %2 = tpu.matmul %0, %1, %cst {dimension_numbers = #tpu.dot_dimension_numbers<[1], [0], [0], [1], [0, 0, 1, 1], [], []>} : vector<8x128xf32>, vector<128x128xf32>, vector<8x128xf32> -> vector<8x128xf32>
    %c0_3 = arith.constant 0 : index
    %c0_4 = arith.constant 0 : index
    %3 = vector.load %arg4[%c0_3, %c0_4] : memref<1x128xf32, #tpu.memory_space<vmem>>, vector<1x128xf32>
    %4 = vector.broadcast %3 : vector<1x128xf32> to vector<8x128xf32>
    %5 = arith.addf %2, %4 : vector<8x128xf32>
    %c0_5 = arith.constant 0 : index
    %c0_6 = arith.constant 0 : index
    %6 = vector.load %arg5[%c0_5, %c0_6] : memref<8x128xf32, #tpu.memory_space<vmem>>, vector<8x128xf32>
    tpu.vector_store %arg5[%c0_5, %c0_6], %5 {strides = array<i32>} : memref<8x128xf32, #tpu.memory_space<vmem>>, vector<8x128xf32>,
    return
  }
  func.func @transform_0(%arg0: i32, %arg1: i32) -> (i32, i32) {
    %c0_i32 = arith.constant 0 : i32
    %c0_i32_0 = arith.constant 0 : i32
    return %arg1, %c0_i32 : i32, i32
  }
  func.func @transform_1(%arg0: i32, %arg1: i32) -> (i32, i32) {
    %c0_i32 = arith.constant 0 : i32
    %c0_i32_0 = arith.constant 0 : i32
    return %c0_i32, %arg0 : i32, i32
  }
  func.func @transform_2(%arg0: i32, %arg1: i32) -> (i32, i32) {
    %c0_i32 = arith.constant 0 : i32
    %c0_i32_0 = arith.constant 0 : i32
    return %c0_i32, %arg0 : i32, i32
  }
  func.func @transform_3(%arg0: i32, %arg1: i32) -> (i32, i32) {
    %c0_i32 = arith.constant 0 : i32
    return %arg1, %arg0 : i32, i32
  }
}

</mosaic_0001>

<llo_original>
// kernel: tpu_custom_call.1
$region0: #{tpu_custom_call.1}
  #allocation0 [shape = 'u32[]', space=smem, size = 0x4, offset = 0x4, fixed_abs, tag = 'smem constant byte address 0x4 - core index']
  #allocation1 [shape = 'u32[72,128]{1,0:T(1,128)}', space=vmem, size = 0x9000, scoped, tag = 'internal scratch']
  %s0 = inlined_call_operand.hbm [shape: f32[16,128], index: 0, kind: input, shape index: {}]
  %s1 = inlined_call_operand.hbm [shape: f32[128,128], index: 1, kind: input, shape index: {}]
  %s2 = inlined_call_operand.vmem [shape: f32[1,128], index: 2, kind: input, shape index: {}]
  %s3 = inlined_call_operand.hbm [shape: f32[16,128], index: 3, kind: output, shape index: {}]
  %s4 = sld [smem:[#allocation0]]
  $region53: #{tpu_custom_call.1} parent=0
    _
  %s6 = ssub.s32 1, %s4
  %s7 = scalar_select 0, %s6, %s4
  $region1: #{tpu_custom_call.1} parent=0
    #allocation2 [shape = 'u8[8192]{0}', space=vmem, size = 0x2000, scoped, tag = 'input window, operand 0']
    #allocation3 [shape = 's32[2]{0}', space=sflag, size = 0x8, scoped, tag = 'scoped memory for tpu_custom_call.1']
    #allocation4 [shape = 's32[2]{0}', space=sflag, size = 0x8, scoped, tag = 'scoped memory for tpu_custom_call.1']
    #allocation5 [shape = 'u8[65536]{0}', space=vmem, size = 0x10000, scoped, tag = 'input window, operand 1, single buffered']
    #allocation6 [shape = 's32[1]{0}', space=sflag, size = 0x4, scoped, tag = 'scoped memory for tpu_custom_call.1']
    #allocation7 [shape = 'u8[8192]{0}', space=vmem, size = 0x2000, scoped, tag = 'output window, operand 0']
    %8 = vsyncpa [#allocation3], 0
    %s9 = scalar_lea.sflag [#allocation3], 1
    %10 = vsyncpa %s9, 0
    %11 = vsyncpa [#allocation6], 0
    %12 = vsyncpa [#allocation4], 0
    %s13 = scalar_lea.sflag [#allocation4], 1
    %14 = vsyncpa %s13, 0
    loop: start=0, step=1, limit=4
    $region2: #{tpu_custom_call.1} parent=1 // loop_pre_header
      _
    $region3: #{tpu_custom_call.1} parent=1 // loop_header
      %s16 = sphi 0, %s20
      %p17 = scmp.ge.s32.totalorder %s16, 4
      %s23 = sphi 0, %s35
      %s24 = sphi 0, %s31
      %s25 = sphi 0, %s23
      %s26 = sphi 0, %s24
      %s27 = sphi 0, %s25
      %s28 = sphi 0, %s26
      %s38 = sphi 0, %s40
      %s41 = sphi 0, %s38
      %s42 = sphi 0, %s41
      %s58 = sphi 0, %s42
      %s64 = sphi 0, %s66
      %s67 = sphi 0, %s64
      %s68 = sphi 0, %s67
      %s84 = sphi 0, %s68
      %s90 = sphi 0, %s92
      %s93 = sphi 0, %s90
      %s94 = sphi 0, %s93
      %s110 = sphi 0, %s94
      %s118 = sphi 0, %s120
      %s121 = sphi 0, %s118
      %s122 = sphi 0, %s121
      %s138 = sphi 0, %s122
    $region4: #{tpu_custom_call.1} parent=1 // loop_header_branch
      %19 = sbr.rel (%p17) target = $region8
    $region5: #{tpu_custom_call.1} parent=1 // loop_body
      %s21 = ssub.s32 %s16, 1
      %s22 = ssub.s32 %s16, 2
      %s29 = sadd.s32 1, %s24
      %p30 = scmp.ge.s32.totalorder %s29, 2
      %s31 = scalar_select %p30, 0, %s29
      %s32 = sadd.s32 1, %s23
      %s33 = scalar_select %p30, %s32, %s23
      %p34 = scmp.ge.s32.totalorder %s33, 1
      %s35 = scalar_select %p34, 0, %s33
      %s36 = ssub.s32 %s24, %s31
      %p37 = scmp.eq.s32.totalorder %s36, 0
      %s39 = sadd.s32 %s38, 1
      %s40 = scalar_select %p37, %s38, %s39
      %p43 = pneg %p37
      %p44 = scmp.eq.s32.totalorder %s16, 1
      %p45 = por %p43, %p44
      %p46 = scmp.ne.s32.totalorder %s38, %s41
      %p47 = scmp.eq.s32.totalorder %s16, 0
      %p48 = por %p46, %p47
      %p49 = scmp.ne.s32.totalorder %s38, %s41
      %p50 = scmp.eq.s32.totalorder %s21, 1
      %p51 = por %p49, %p50
      %p52 = scmp.ne.s32.totalorder %s41, %s42
      %p53 = scmp.eq.s32.totalorder %s21, 0
      %p54 = por %p52, %p53
      %p55 = scmp.ne.s32.totalorder %s41, %s42
      %p56 = scmp.eq.s32.totalorder %s22, 1
      %p57 = por %p55, %p56
      %p59 = scmp.ne.s32.totalorder %s42, %s58
      %p60 = scmp.eq.s32.totalorder %s22, 0
      %p61 = por %p59, %p60
      %s62 = ssub.s32 %s23, %s35
      %p63 = scmp.eq.s32.totalorder %s62, 0
      %s65 = sadd.s32 %s64, 1
      %s66 = scalar_select %p63, %s64, %s65
      %p69 = pneg %p63
      %p70 = scmp.eq.s32.totalorder %s16, 1
      %p71 = por %p69, %p70
      %p72 = scmp.ne.s32.totalorder %s64, %s67
      %p73 = scmp.eq.s32.totalorder %s16, 0
      %p74 = por %p72, %p73
      %p75 = scmp.ne.s32.totalorder %s64, %s67
      %p76 = scmp.eq.s32.totalorder %s21, 1
      %p77 = por %p75, %p76
      %p78 = scmp.ne.s32.totalorder %s67, %s68
      %p79 = scmp.eq.s32.totalorder %s21, 0
      %p80 = por %p78, %p79
      %p81 = scmp.ne.s32.totalorder %s67, %s68
      %p82 = scmp.eq.s32.totalorder %s22, 1
      %p83 = por %p81, %p82
      %p85 = scmp.ne.s32.totalorder %s68, %s84
      %p86 = scmp.eq.s32.totalorder %s22, 0
      %p87 = por %p85, %p86
      %s88 = ssub.s32 %s23, %s35
      %p89 = scmp.eq.s32.totalorder %s88, 0
      %s91 = sadd.s32 %s90, 1
      %s92 = scalar_select %p89, %s90, %s91
      %p95 = pneg %p89
      %p96 = scmp.eq.s32.totalorder %s16, 1
      %p97 = por %p95, %p96
      %p98 = scmp.ne.s32.totalorder %s90, %s93
      %p99 = scmp.eq.s32.totalorder %s16, 0
      %p100 = por %p98, %p99
      %p101 = scmp.ne.s32.totalorder %s90, %s93
      %p102 = scmp.eq.s32.totalorder %s21, 1
      %p103 = por %p101, %p102
      %p104 = scmp.ne.s32.totalorder %s93, %s94
      %p105 = scmp.eq.s32.totalorder %s21, 0
      %p106 = por %p104, %p105
      %p107 = scmp.ne.s32.totalorder %s93, %s94
      %p108 = scmp.eq.s32.totalorder %s22, 1
      %p109 = por %p107, %p108
      %p111 = scmp.ne.s32.totalorder %s94, %s110
      %p112 = scmp.eq.s32.totalorder %s22, 0
      %p113 = por %p111, %p112
      %s114 = ssub.s32 %s24, %s31
      %s115 = ssub.s32 %s23, %s35
      %s116 = sor.u32 %s114, %s115
      %p117 = scmp.eq.s32.totalorder %s116, 0
      %s119 = sadd.s32 %s118, 1
      %s120 = scalar_select %p117, %s118, %s119
      %p123 = pneg %p117
      %p124 = scmp.eq.s32.totalorder %s16, 1
      %p125 = por %p123, %p124
      %p126 = scmp.ne.s32.totalorder %s118, %s121
      %p127 = scmp.eq.s32.totalorder %s16, 0
      %p128 = por %p126, %p127
      %p129 = scmp.ne.s32.totalorder %s118, %s121
      %p130 = scmp.eq.s32.totalorder %s21, 1
      %p131 = por %p129, %p130
      %p132 = scmp.ne.s32.totalorder %s121, %s122
      %p133 = scmp.eq.s32.totalorder %s21, 0
      %p134 = por %p132, %p133
      %p135 = scmp.ne.s32.totalorder %s121, %s122
      %p136 = scmp.eq.s32.totalorder %s22, 1
      %p137 = por %p135, %p136
      %p139 = scmp.ne.s32.totalorder %s122, %s138
      %p140 = scmp.eq.s32.totalorder %s22, 0
      %p141 = por %p139, %p140
      %p142 = scmp.le.s32.totalorder 1, %s16
      %p143 = scmp.lt.s32.totalorder %s16, 3
      %p144 = pnand %p142, %p143
      %p145 = pneg %p144
      // Predicated region
      $region9: #{tpu_custom_call.1} parent=5 // pred_check
        _
      $region10: #{tpu_custom_call.1} parent=5 // pred_check_branch
        %147 = sbr.rel (%p144) target = $region12
      $region11: #{tpu_custom_call.1} parent=5 // pred_region
        %s148 = ssub.s32 %s16, 1
        // Predicated region
        $region13: #{tpu_custom_call.1} parent=11 // pred_check
          %p149 = pneg %p80
        $region14: #{tpu_custom_call.1} parent=11 // pred_check_branch
          %151 = sbr.rel (%p149) target = $region16
        $region15: #{tpu_custom_call.1} parent=11 // pred_region
          %153 = vsyncadd [#allocation6], 0
          %s154 = smul.addr %s25, 8
          %s155 = scalar_lea.hbm %s1, %s154
          %s156 = sshll.u32 %s155, 4
          %s157 = int_to_ptr.hbm [resolvable:$true] %s156
          %s158 = sshll.u32 [#allocation5], 4
          %s159 = int_to_ptr.vmem [resolvable:$true] %s158
          %164 = dma.hbm_to_vmem [thread:$0]  %s157, 2048, %s159, [#allocation6], 128, 128, 8
        $region16: #{tpu_custom_call.1} parent=11 // pred_fallthru
          _
        // Predicated region
        $region17: #{tpu_custom_call.1} parent=11 // pred_check
          %p165 = pneg %p106
        $region18: #{tpu_custom_call.1} parent=11 // pred_check_branch
          %167 = sbr.rel (%p165) target = $region20
        $region19: #{tpu_custom_call.1} parent=11 // pred_region
          %p168 = scmp.lt.s32.totalorder %s25, 0
          %s169 = scalar_select %p168, %s25, 0
          %s170 = scalar_lea.vmem %s2, %s169
        $region20: #{tpu_custom_call.1} parent=11 // pred_fallthru
          _
      $region12: #{tpu_custom_call.1} parent=5 // pred_fallthru
        _
      %p171 = scmp.lt.s32.totalorder %s16, 2
      // Predicated region
      $region21: #{tpu_custom_call.1} parent=5 // pred_check
        %p172 = pneg %p171
      $region22: #{tpu_custom_call.1} parent=5 // pred_check_branch
        %174 = sbr.rel (%p172) target = $region24
      $region23: #{tpu_custom_call.1} parent=5 // pred_region
        // Predicated region
        $region25: #{tpu_custom_call.1} parent=23 // pred_check
          %p175 = pneg %p48
        $region26: #{tpu_custom_call.1} parent=23 // pred_check_branch
          %177 = sbr.rel (%p175) target = $region28
        $region27: #{tpu_custom_call.1} parent=23 // pred_region
          %s178 = sand.u32 %s38, 1
          %s179 = scalar_lea.sflag [#allocation3], %s178
          %s180 = sand.u32 %s38, 1
          %s181 = smul.addr %s180, 8
          %s182 = scalar_lea.vmem [#allocation2], %s181
          %184 = vsyncadd %s179, 0
          %s185 = smul.addr %s24, 8
          %s186 = scalar_lea.hbm %s0, %s185
          %s188 = sshll.u32 %s186, 4
          %s189 = int_to_ptr.hbm [resolvable:$true] %s188
          %s190 = sshll.u32 %s182, 4
          %s191 = int_to_ptr.vmem [resolvable:$true] %s190
          %193 = dma.hbm_to_vmem [thread:$0]  %s189, 128, %s191, %s179
        $region28: #{tpu_custom_call.1} parent=23 // pred_fallthru
          _
      $region24: #{tpu_custom_call.1} parent=5 // pred_fallthru
        _
      %p194 = scmp.le.s32.totalorder 1, %s16
      %p195 = scmp.lt.s32.totalorder %s16, 3
      %p196 = pnand %p194, %p195
      %p197 = pneg %p196
      // Predicated region
      $region29: #{tpu_custom_call.1} parent=5 // pred_check
        _
      $region30: #{tpu_custom_call.1} parent=5 // pred_check_branch
        %199 = sbr.rel (%p196) target = $region32
      $region31: #{tpu_custom_call.1} parent=5 // pred_region
        %s200 = ssub.s32 %s16, 1
        %s201 = sand.u32 %s41, 1
        %s202 = scalar_lea.sflag [#allocation3], %s201
        %s203 = sand.u32 %s41, 1
        %s204 = smul.addr %s203, 8
        %s205 = scalar_lea.vmem [#allocation2], %s204
        // Predicated region
        $region33: #{tpu_custom_call.1} parent=31 // pred_check
          %p206 = pneg %p54
        $region34: #{tpu_custom_call.1} parent=31 // pred_check_branch
          %208 = sbr.rel (%p206) target = $region36
        $region35: #{tpu_custom_call.1} parent=31 // pred_region
          %210 = dma.done %s202, 128
        $region36: #{tpu_custom_call.1} parent=31 // pred_fallthru
          _
        // Predicated region
        $region37: #{tpu_custom_call.1} parent=31 // pred_check
          %p211 = pneg %p80
        $region38: #{tpu_custom_call.1} parent=31 // pred_check_branch
          %213 = sbr.rel (%p211) target = $region40
        $region39: #{tpu_custom_call.1} parent=31 // pred_region
          %215 = dma.done [#allocation6], 2048
        $region40: #{tpu_custom_call.1} parent=31 // pred_fallthru
          _
        %s216 = sand.u32 %s41, 1
        %s217 = scalar_lea.sflag [#allocation3], %s216
        %s218 = sand.u32 %s41, 1
        %s219 = smul.addr %s218, 8
        %s220 = scalar_lea.vmem [#allocation2], %s219
        %p221 = pneg %p54
        %p222 = pneg %p51
        %p223 = pneg %p80
        %p224 = pneg %p77
        %p225 = scmp.lt.s32.totalorder %s25, 0
        %s226 = scalar_select %p225, %s25, 0
        %s227 = scalar_lea.vmem %s2, %s226
        %p228 = pneg %p106
        %p229 = pneg %p103
        %p230 = pneg %p134
        %p231 = pneg %p131
        %s232 = sand.u32 %s121, 1
        %s233 = scalar_lea.sflag [#allocation4], %s232
        %s234 = sand.u32 %s121, 1
        %s235 = smul.addr %s234, 8
        %s236 = scalar_lea.vmem [#allocation7], %s235
        %p237 = scmp.lt.s32.totalorder %s25, 0
        %s238 = scalar_select %p237, %s25, 0
        %s239 = scalar_lea.vmem %s2, %s238
        %v240 = vld [vmem:[%s205] sm:$0xff]
        %v241 = vld [vmem:[#allocation5] sm:$0xff]
        %v242 = vld [vmem:[#allocation5 + $0x8] sm:$0xff]
        %v243 = vld [vmem:[#allocation5 + $0x10] sm:$0xff]
        %v244 = vld [vmem:[#allocation5 + $0x18] sm:$0xff]
        %v245 = vld [vmem:[#allocation5 + $0x20] sm:$0xff]
        %v246 = vld [vmem:[#allocation5 + $0x28] sm:$0xff]
        %v247 = vld [vmem:[#allocation5 + $0x30] sm:$0xff]
        %v248 = vld [vmem:[#allocation5 + $0x38] sm:$0xff]
        %v249 = vld [vmem:[#allocation5 + $0x40] sm:$0xff]
        %v250 = vld [vmem:[#allocation5 + $0x48] sm:$0xff]
        %v251 = vld [vmem:[#allocation5 + $0x50] sm:$0xff]
        %v252 = vld [vmem:[#allocation5 + $0x58] sm:$0xff]
        %v253 = vld [vmem:[#allocation5 + $0x60] sm:$0xff]
        %v254 = vld [vmem:[#allocation5 + $0x68] sm:$0xff]
        %v255 = vld [vmem:[#allocation5 + $0x70] sm:$0xff]
        %v256 = vld [vmem:[#allocation5 + $0x78] sm:$0xff]
        %v257 = vld [vmem:[%s239] sm:$0x1]
        %v259 = vperm.slane %v257, 0
        %261 = vmatpush.msra.mxu0 %v256
        %262 = vmatpush.msra.mxu0 %v255
        %263 = vmatpush.msra.mxu0 %v254
        %264 = vmatpush.msra.mxu0 %v253
        %265 = vmatpush.msra.mxu0 %v252
        %266 = vmatpush.msra.mxu0 %v251
        %267 = vmatpush.msra.mxu0 %v250
        %268 = vmatpush.msra.mxu0 %v249
        %269 = vmatpush.msra.mxu0 %v248
        %270 = vmatpush.msra.mxu0 %v247
        %271 = vmatpush.msra.mxu0 %v246
        %272 = vmatpush.msra.mxu0 %v245
        %273 = vmatpush.msra.mxu0 %v244
        %274 = vmatpush.msra.mxu0 %v243
        %275 = vmatpush.msra.mxu0 %v242
        %276 = vmatpush.msra.mxu0 %v241
        %277 = vmatmul.f32.gmra.mxu0 %v240
        %v278 = vpop.f32.mrf.mxu0
        %v279 = vadd.f32 %v259, %v278
        %280 = vdwg.mxu0
        %281 = vst [vmem:[%s236] sm:$0xff] %v279
        %s282 = sand.u32 %s121, 1
        %s283 = scalar_lea.sflag [#allocation4], %s282
        %s284 = sand.u32 %s121, 1
        %s285 = smul.addr %s284, 8
        %s286 = scalar_lea.vmem [#allocation7], %s285
        // Predicated region
        $region41: #{tpu_custom_call.1} parent=31 // pred_check
          %p287 = pneg %p131
        $region42: #{tpu_custom_call.1} parent=31 // pred_check_branch
          %289 = sbr.rel (%p287) target = $region44
        $region43: #{tpu_custom_call.1} parent=31 // pred_region
          %291 = vsyncadd %s283, 0
          %s292 = sadd.s32 %s25, %s26
          %s293 = smul.addr %s292, 8
          %s294 = scalar_lea.hbm %s3, %s293
          %s296 = sshll.u32 %s286, 4
          %s297 = int_to_ptr.vmem [resolvable:$true] %s296
          %s298 = sshll.u32 %s294, 4
          %s299 = int_to_ptr.hbm [resolvable:$true] %s298
          %301 = dma.vmem_to_hbm [thread:$0]  %s297, 128, %s299, %s283
        $region44: #{tpu_custom_call.1} parent=31 // pred_fallthru
          _
      $region32: #{tpu_custom_call.1} parent=5 // pred_fallthru
        _
      %p302 = scmp.le.s32.totalorder 2, %s16
      // Predicated region
      $region45: #{tpu_custom_call.1} parent=5 // pred_check
        %p303 = pneg %p302
      $region46: #{tpu_custom_call.1} parent=5 // pred_check_branch
        %305 = sbr.rel (%p303) target = $region48
      $region47: #{tpu_custom_call.1} parent=5 // pred_region
        %s306 = ssub.s32 %s16, 2
        // Predicated region
        $region49: #{tpu_custom_call.1} parent=47 // pred_check
          %p307 = pneg %p137
        $region50: #{tpu_custom_call.1} parent=47 // pred_check_branch
          %309 = sbr.rel (%p307) target = $region52
        $region51: #{tpu_custom_call.1} parent=47 // pred_region
          %s310 = sand.u32 %s122, 1
          %s311 = scalar_lea.sflag [#allocation4], %s310
          %s312 = sand.u32 %s122, 1
          %s313 = smul.addr %s312, 8
          %s314 = scalar_lea.vmem [#allocation7], %s313
          %316 = dma.done %s311, 128
        $region52: #{tpu_custom_call.1} parent=47 // pred_fallthru
          _
      $region48: #{tpu_custom_call.1} parent=5 // pred_fallthru
        _
    $region6: #{tpu_custom_call.1} parent=1 // loop_footer
      %s20 = sadd.s32 1, %s16
    $region7: #{tpu_custom_call.1} parent=1 // loop_footer_branch
      %15 = sbr.rel target = $region3
    $region8: #{tpu_custom_call.1} parent=1 // loop_exit
      _
    %317 = vsyncpa [#allocation3], 1
    %s318 = scalar_lea.sflag [#allocation3], 1
    %319 = vsyncpa %s318, 1
    %320 = vsyncpa [#allocation6], 1
    %321 = vsyncpa [#allocation4], 1
    %s322 = scalar_lea.sflag [#allocation4], 1
    %323 = vsyncpa %s322, 1

</llo_original>
